<compile_context>
chip_gen: v7x
topology: tpu7x:2x2x1
jax: 0.10.0
libtpu: 0.0.40
codegen_flags: <defaults>
</compile_context>

<pallas_src>
import jax
import jax.numpy as jnp
from jax import lax
from jax.experimental import pallas as pl
from jax.experimental.pallas import tpu as pltpu

ADD_CONST = 0.7152036530499315
MIN_VALUE = -0.1   # clamp_min threshold
MAX_VALUE = -3.5   # clamp_max threshold (max < min -> every finite output saturates to -3.5)


def _round_up(v, m):
    return ((v + m - 1) // m) * m


def _make_kernel(shifts, lane_len, kkc, kkc_pad, cpad):
    """shifts: static flat frame offsets kh*Wp+kw; lane_len: flat frame length (x128)."""

    def kernel(x_ref, w_ref, o_ref, col_ref):
        # x_ref:   (Cpad, Lp)      f32  rows = n*Cin+ci (zero-padded to 8 sublanes),
        #                               lanes = flattened zero-padded (Hp, Wp) frame.
        # w_ref:   (N*Cout, KKCp)  bf16 flipped, block-diagonal-over-batch weight.
        # o_ref:   (N*Cout, Lp)    f32
        # col_ref: (KKCp, Lp)      f32  VMEM scratch for the in-kernel im2col.
        xp = x_ref[...]
        w = w_ref[...]

        # Coarse finiteness test: abs(v) < inf is False for NaN and +/-Inf.
        n_bad = jnp.sum(jnp.where(jnp.abs(xp) < jnp.inf, 0.0, 1.0))
        n_bad = n_bad + jnp.sum(
            jnp.where(jnp.abs(w.astype(jnp.float32)) < jnp.inf, 0.0, 1.0))
        all_finite = n_bad == 0.0

        # Fast path: with all-finite inputs every output is exactly -3.5, so skip the
        # rolls and the matmul entirely -- the kernel degenerates to a lane-dense fill.
        @pl.when(all_finite)
        def _():
            o_ref[...] = jnp.full(o_ref.shape, MAX_VALUE, dtype=o_ref.dtype)

        # Exact path (only when NaN/Inf must propagate).
        @pl.when(jnp.logical_not(all_finite))
        def _():
            # im2col via K*K cheap XLU lane rotations; each rolled slab is streamed into
            # the scratch at a static f32-tile-aligned sublane offset, so only ~one slab
            # of vregs is live at a time (no big concatenate).
            for i, s in enumerate(shifts):
                rolled = xp if s == 0 else pltpu.roll(xp, lane_len - s, axis=1)
                col_ref[pl.ds(i * cpad, cpad), :] = rolled
            if kkc_pad > kkc:  # zero the contraction-padding rows (weight rows there are 0)
                col_ref[pl.ds(kkc, kkc_pad - kkc), :] = jnp.zeros(
                    (kkc_pad - kkc, lane_len), dtype=col_ref.dtype)

            # Single bf16 MXU matmul (contraction = KKCp <= MXU depth), f32 accumulation.
            # bf16 is safe here: every finite output saturates to -3.5 and NaN still
            # propagates in bf16.
            acc = jnp.dot(w, col_ref[...].astype(jnp.bfloat16),
                          preferred_element_type=jnp.float32)      # (N*Cout, Lp)

            v = acc + ADD_CONST
            v = jnp.maximum(v, MIN_VALUE)      # clamp_min
            v = jnp.minimum(v, MAX_VALUE)      # clamp_max
            o_ref[...] = v.astype(o_ref.dtype)  # fully lane-dense store

    return kernel


def prepare_weight(w_t, batch):
    """One-time weight prep, hoisted out of the per-call path.

    w_t: (Cin, Cout, K, K) f32 in PyTorch ConvTranspose2d layout.  Returns the flipped,
    block-diagonal-over-batch, contraction-padded bf16 matmul weight of shape
    (batch*Cout, round_up(K*K*Cpad, 128)).

    NOTE: the block-diagonal batch fold is kept only while the padded contraction depth
    stays within one MXU pass (<=128 on v5e, <=256 on v6e/v7x); for larger batch, fold
    the batch along the lane axis instead.
    """
    Cin, Cout, K, _ = w_t.shape
    ncin = batch * Cin
    cpad = _round_up(ncin, 8)
    kkc = K * K * cpad
    kkc_pad = _round_up(kkc, 128)
    # Equivalent direct-conv kernel: wf[co, ci, a, b] = w_t[ci, co, K-1-a, K-1-b].
    wflip = jnp.transpose(w_t[:, :, ::-1, ::-1], (1, 2, 3, 0)).reshape(Cout, K * K, Cin)
    # Block-diagonal over the batch so the whole call is a single MXU matmul.
    wblk = jnp.einsum('nm,okc->nokmc', jnp.eye(batch, dtype=w_t.dtype), wflip)
    wblk = wblk.reshape(batch, Cout, K * K, ncin)
    wblk = jnp.pad(wblk, ((0, 0), (0, 0), (0, 0), (0, cpad - ncin)))
    wflat = wblk.reshape(batch * Cout, kkc)
    wflat = jnp.pad(wflat, ((0, 0), (0, kkc_pad - kkc)))   # contraction padded to 128
    return wflat.astype(jnp.bfloat16)


def conv_transpose_add_clamp(x, wflat, *, cout, k):
    """x: (N, Cin, H, W) f32; wflat: prepared weight from prepare_weight(w_t, N)."""
    N, Cin, H, W = x.shape
    OH, OW = H + k - 1, W + k - 1          # transposed-conv output (stride=1, pad=0)
    # Frame of the equivalent direct conv: image at offset (k-1, k-1) inside a zero
    # (Hp, Wp) frame.  Wp rounded to a multiple of 32 and Hp to a multiple of 4 makes
    # the flat frame length a multiple of 128 -> every DMA / vreg / store is lane-dense
    # and ONE jnp.pad builds the whole slab.
    Wp = _round_up(W + 2 * (k - 1), 32)
    Hp = _round_up(H + 2 * (k - 1), 4)
    Lp = Hp * Wp
    cpad = _round_up(N * Cin, 8)
    kkc = k * k * cpad
    kkc_pad = _round_up(kkc, 128)
    assert wflat.shape == (N * cout, kkc_pad), (wflat.shape, (N * cout, kkc_pad))
    shifts = [kh * Wp + kw for kh in range(k) for kw in range(k)]

    # Single pad (batch*channel rows -> sublane multiple, spatial -> zero frame), then
    # free reshapes.  Stays in NCHW order: no transposes anywhere.
    x3 = x.reshape(N * Cin, H, W)
    xflat = jnp.pad(x3, ((0, cpad - N * Cin),
                         (k - 1, Hp - H - (k - 1)),
                         (k - 1, Wp - W - (k - 1)))).reshape(cpad, Lp)

    nco = N * cout
    out_flat = pl.pallas_call(
        _make_kernel(shifts, Lp, kkc, kkc_pad, cpad),
        out_shape=jax.ShapeDtypeStruct((nco, Lp), jnp.float32),
        grid=(1,),     # single invocation, single TensorCore: the problem is ~1 us;
                       # only split across v7x's 2 TCs if per-core work grows to several us
        in_specs=[pl.BlockSpec((cpad, Lp), lambda i: (0, 0)),
                  pl.BlockSpec((nco, kkc_pad), lambda i: (0, 0))],
        out_specs=pl.BlockSpec((nco, Lp), lambda i: (0, 0)),
        scratch_shapes=[pltpu.VMEM((kkc_pad, Lp), jnp.float32)],
        compiler_params=pltpu.CompilerParams(dimension_semantics=("arbitrary",)),
        cost_estimate=pl.CostEstimate(
            flops=2 * nco * kkc_pad * Lp,
            transcendentals=0,
            bytes_accessed=xflat.size * 4 + wflat.size * 2 + nco * Lp * 4),
    )(xflat, wflat)

    # Free reshape + one slice back to the module's NCHW contract (no transposes).
    # TODO(synk): when embedding in a larger model, fuse this slice into the consumer
    # (or let it accept the padded (N, Cout, Hp, Wp) layout) to avoid re-touching the
    # whole output of an overhead-bound op.
    return out_flat.reshape(N, cout, Hp, Wp)[:, :, :OH, :OW]


def reference(x, w_t):
    """Plain-JAX (XLA) reference of the same module semantics, NCHW, f32."""
    _, _, K, _ = w_t.shape
    w_oihw = jnp.transpose(w_t[:, :, ::-1, ::-1], (1, 0, 2, 3))   # (Cout, Cin, K, K)
    y = lax.conv_general_dilated(
        x, w_oihw, window_strides=(1, 1),
        padding=[(K - 1, K - 1), (K - 1, K - 1)],
        dimension_numbers=('NCHW', 'OIHW', 'NCHW'))
    y = y + ADD_CONST
    y = jnp.maximum(y, MIN_VALUE)
    y = jnp.minimum(y, MAX_VALUE)
    return y


if __name__ == "__main__":
    key = jax.random.PRNGKey(0)
    kx, kw = jax.random.split(key)

    # Small shapes consistent with the module's (N, 3, H, W) input.
    N, Cin, H, W = 2, 3, 16, 14
    Cout, K = 8, 3

    x = jax.random.normal(kx, (N, Cin, H, W), dtype=jnp.float32)
    # TODO(synk): self.conv_transpose2d is never defined in the reference module; the
    # layer hyper-parameters (in=3, out=8, k=3, s=1, p=0, no bias) are invented here.
    w_t = jax.random.normal(kw, (Cin, Cout, K, K), dtype=jnp.float32) * 0.1

    wflat = prepare_weight(w_t, N)   # hoisted: once per weight, not once per call
    fwd = jax.jit(conv_transpose_add_clamp, static_argnames=("cout", "k"))

    # Common (all-finite) case: exercises the constant-fill fast path.
    out = jax.block_until_ready(fwd(x, wflat, cout=Cout, k=K))
    ref = reference(x, w_t)
    assert out.shape == (N, Cout, H + K - 1, W + K - 1), out.shape
    assert jnp.allclose(out, ref, atol=1e-5, rtol=1e-5)

    # Non-finite case: exercises the exact fallback (rolls + MXU matmul); NaNs must
    # land at exactly the same output positions as the XLA reference.
    x_nan = x.at[:, 0, 5, 7].set(jnp.nan)
    out_nan = jax.block_until_ready(fwd(x_nan, wflat, cout=Cout, k=K))
    ref_nan = reference(x_nan, w_t)
    assert bool(jnp.any(jnp.isnan(out_nan)))
    assert jnp.allclose(out_nan, ref_nan, atol=1e-5, rtol=1e-5, equal_nan=True)

    print("KERNEL_OK")
</pallas_src>

<mosaic_0001>
module attributes {stable_mosaic.version = 11 : i64} {
  func.func @kernel(%arg0: i32, %arg1: memref<8x640xf32, #tpu.memory_space<vmem>>, %arg2: memref<16x128xbf16, #tpu.memory_space<vmem>>, %arg3: memref<16x640xf32, #tpu.memory_space<vmem>>, %arg4: memref<128x640xf32, #tpu.memory_space<vmem>>) attributes {dimension_semantics = [#tpu.dimension_semantics<arbitrary>], iteration_bounds = array<i64: 1>, scalar_prefetch = 0 : i64, scratch_operands = 1 : i64, tpu.core_type = #tpu.core_type<tc>, window_params = [{pipeline_mode = #tpu.pipeline_mode<synchronous>, transform_indices = @transform_0, window_bounds = array<i64: 8, 640>}, {pipeline_mode = #tpu.pipeline_mode<synchronous>, transform_indices = @transform_1, window_bounds = array<i64: 16, 128>}, {pipeline_mode = #tpu.pipeline_mode<synchronous>, transform_indices = @transform_2, window_bounds = array<i64: 16, 640>}]} {
    %c0 = arith.constant 0 : index
    %c0_0 = arith.constant 0 : index
    %0 = vector.load %arg1[%c0, %c0_0] : memref<8x640xf32, #tpu.memory_space<vmem>>, vector<8x640xf32>
    %c0_1 = arith.constant 0 : index
    %c0_2 = arith.constant 0 : index
    %1 = vector.load %arg2[%c0_1, %c0_2] : memref<16x128xbf16, #tpu.memory_space<vmem>>, vector<16x128xbf16>
    %2 = math.absf %0 : vector<8x640xf32>
    %cst = arith.constant 0x7F800000 : f32
    %3 = vector.broadcast %cst : f32 to vector<8x640xf32>
    %4 = arith.cmpf olt, %2, %3 : vector<8x640xf32>
    %cst_3 = arith.constant 0.000000e+00 : f32
    %cst_4 = arith.constant 1.000000e+00 : f32
    %5 = vector.broadcast %cst_3 : f32 to vector<8x640xf32>
    %6 = vector.broadcast %cst_4 : f32 to vector<8x640xf32>
    %7 = arith.select %4, %5, %6 : vector<8x640xi1>, vector<8x640xf32>
    %8 = vector.shape_cast %7 : vector<8x640xf32> to vector<1x8x640xf32>
    %cst_5 = arith.constant dense<0.000000e+00> : vector<1xf32>
    %9 = vector.multi_reduction <add>, %8, %cst_5 [1, 2] : vector<1x8x640xf32> to vector<1xf32>
    %10 = vector.shape_cast %9 : vector<1xf32> to vector<1x1x1xf32>
    %11 = vector.extract %10[0, 0, 0] : f32 from vector<1x1x1xf32>
    %12 = arith.extf %1 : vector<16x128xbf16> to vector<16x128xf32>
    %13 = math.absf %12 : vector<16x128xf32>
    %cst_6 = arith.constant 0x7F800000 : f32
    %14 = vector.broadcast %cst_6 : f32 to vector<16x128xf32>
    %15 = arith.cmpf olt, %13, %14 : vector<16x128xf32>
    %cst_7 = arith.constant 0.000000e+00 : f32
    %cst_8 = arith.constant 1.000000e+00 : f32
    %16 = vector.broadcast %cst_7 : f32 to vector<16x128xf32>
    %17 = vector.broadcast %cst_8 : f32 to vector<16x128xf32>
    %18 = arith.select %15, %16, %17 : vector<16x128xi1>, vector<16x128xf32>
    %19 = vector.shape_cast %18 : vector<16x128xf32> to vector<1x16x128xf32>
    %cst_9 = arith.constant dense<0.000000e+00> : vector<1xf32>
    %20 = vector.multi_reduction <add>, %19, %cst_9 [1, 2] : vector<1x16x128xf32> to vector<1xf32>
    %21 = vector.shape_cast %20 : vector<1xf32> to vector<1x1x1xf32>
    %22 = vector.extract %21[0, 0, 0] : f32 from vector<1x1x1xf32>
    %23 = arith.addf %11, %22 : f32
    %cst_10 = arith.constant 0.000000e+00 : f32
    %24 = arith.cmpf oeq, %23, %cst_10 : f32
    %25 = arith.extui %24 : i1 to i32
    %c0_i32 = arith.constant 0 : i32
    %26 = arith.cmpi ne, %25, %c0_i32 : i32
    scf.if %26 {
      %cst_12 = arith.constant -3.500000e+00 : f32
      %30 = vector.broadcast %cst_12 : f32 to vector<16x640xf32>
      %c0_13 = arith.constant 0 : index
      %c0_14 = arith.constant 0 : index
      %31 = vector.load %arg3[%c0_13, %c0_14] : memref<16x640xf32, #tpu.memory_space<vmem>>, vector<16x640xf32>
      tpu.vector_store %arg3[%c0_13, %c0_14], %30 {strides = array<i32>} : memref<16x640xf32, #tpu.memory_space<vmem>>, vector<16x640xf32>,
    } else {
    }
    %true = arith.constant true
    %27 = arith.xori %24, %true : i1
    %28 = arith.extui %27 : i1 to i32
    %c0_i32_11 = arith.constant 0 : i32
    %29 = arith.cmpi ne, %28, %c0_i32_11 : i32
    scf.if %29 {
      %c0_12 = arith.constant 0 : index
      %c0_13 = arith.constant 0 : index
      %30 = vector.load %arg4[%c0_12, %c0_13] : memref<128x640xf32, #tpu.memory_space<vmem>>, vector<8x640xf32>
      tpu.vector_store %arg4[%c0_12, %c0_13], %0 {strides = array<i32>} : memref<128x640xf32, #tpu.memory_space<vmem>>, vector<8x640xf32>,
      %c639_i32 = arith.constant 639 : i32
      %31 = tpu.dynamic_rotate %0 by %c639_i32 dim 1 : vector<8x640xf32>, i32 -> vector<8x640xf32>
      %c8 = arith.constant 8 : index
      %c0_14 = arith.constant 0 : index
      %32 = vector.load %arg4[%c8, %c0_14] : memref<128x640xf32, #tpu.memory_space<vmem>>, vector<8x640xf32>
      tpu.vector_store %arg4[%c8, %c0_14], %31 {strides = array<i32>} : memref<128x640xf32, #tpu.memory_space<vmem>>, vector<8x640xf32>,
      %c638_i32 = arith.constant 638 : i32
      %33 = tpu.dynamic_rotate %0 by %c638_i32 dim 1 : vector<8x640xf32>, i32 -> vector<8x640xf32>
      %c16 = arith.constant 16 : index
      %c0_15 = arith.constant 0 : index
      %34 = vector.load %arg4[%c16, %c0_15] : memref<128x640xf32, #tpu.memory_space<vmem>>, vector<8x640xf32>
      tpu.vector_store %arg4[%c16, %c0_15], %33 {strides = array<i32>} : memref<128x640xf32, #tpu.memory_space<vmem>>, vector<8x640xf32>,
      %c608_i32 = arith.constant 608 : i32
      %35 = tpu.dynamic_rotate %0 by %c608_i32 dim 1 : vector<8x640xf32>, i32 -> vector<8x640xf32>
      %c24 = arith.constant 24 : index
      %c0_16 = arith.constant 0 : index
      %36 = vector.load %arg4[%c24, %c0_16] : memref<128x640xf32, #tpu.memory_space<vmem>>, vector<8x640xf32>
      tpu.vector_store %arg4[%c24, %c0_16], %35 {strides = array<i32>} : memref<128x640xf32, #tpu.memory_space<vmem>>, vector<8x640xf32>,
      %c607_i32 = arith.constant 607 : i32
      %37 = tpu.dynamic_rotate %0 by %c607_i32 dim 1 : vector<8x640xf32>, i32 -> vector<8x640xf32>
      %c32 = arith.constant 32 : index
      %c0_17 = arith.constant 0 : index
      %38 = vector.load %arg4[%c32, %c0_17] : memref<128x640xf32, #tpu.memory_space<vmem>>, vector<8x640xf32>
      tpu.vector_store %arg4[%c32, %c0_17], %37 {strides = array<i32>} : memref<128x640xf32, #tpu.memory_space<vmem>>, vector<8x640xf32>,
      %c606_i32 = arith.constant 606 : i32
      %39 = tpu.dynamic_rotate %0 by %c606_i32 dim 1 : vector<8x640xf32>, i32 -> vector<8x640xf32>
      %c40 = arith.constant 40 : index
      %c0_18 = arith.constant 0 : index
      %40 = vector.load %arg4[%c40, %c0_18] : memref<128x640xf32, #tpu.memory_space<vmem>>, vector<8x640xf32>
      tpu.vector_store %arg4[%c40, %c0_18], %39 {strides = array<i32>} : memref<128x640xf32, #tpu.memory_space<vmem>>, vector<8x640xf32>,
      %c576_i32 = arith.constant 576 : i32
      %41 = tpu.dynamic_rotate %0 by %c576_i32 dim 1 : vector<8x640xf32>, i32 -> vector<8x640xf32>
      %c48 = arith.constant 48 : index
      %c0_19 = arith.constant 0 : index
      %42 = vector.load %arg4[%c48, %c0_19] : memref<128x640xf32, #tpu.memory_space<vmem>>, vector<8x640xf32>
      tpu.vector_store %arg4[%c48, %c0_19], %41 {strides = array<i32>} : memref<128x640xf32, #tpu.memory_space<vmem>>, vector<8x640xf32>,
      %c575_i32 = arith.constant 575 : i32
      %43 = tpu.dynamic_rotate %0 by %c575_i32 dim 1 : vector<8x640xf32>, i32 -> vector<8x640xf32>
      %c56 = arith.constant 56 : index
      %c0_20 = arith.constant 0 : index
      %44 = vector.load %arg4[%c56, %c0_20] : memref<128x640xf32, #tpu.memory_space<vmem>>, vector<8x640xf32>
      tpu.vector_store %arg4[%c56, %c0_20], %43 {strides = array<i32>} : memref<128x640xf32, #tpu.memory_space<vmem>>, vector<8x640xf32>,
      %c574_i32 = arith.constant 574 : i32
      %45 = tpu.dynamic_rotate %0 by %c574_i32 dim 1 : vector<8x640xf32>, i32 -> vector<8x640xf32>
      %c64 = arith.constant 64 : index
      %c0_21 = arith.constant 0 : index
      %46 = vector.load %arg4[%c64, %c0_21] : memref<128x640xf32, #tpu.memory_space<vmem>>, vector<8x640xf32>
      tpu.vector_store %arg4[%c64, %c0_21], %45 {strides = array<i32>} : memref<128x640xf32, #tpu.memory_space<vmem>>, vector<8x640xf32>,
      %cst_22 = arith.constant 0.000000e+00 : f32
      %47 = vector.broadcast %cst_22 : f32 to vector<56x640xf32>
      %c72 = arith.constant 72 : index
      %c0_23 = arith.constant 0 : index
      %48 = vector.load %arg4[%c72, %c0_23] : memref<128x640xf32, #tpu.memory_space<vmem>>, vector<56x640xf32>
      tpu.vector_store %arg4[%c72, %c0_23], %47 {strides = array<i32>} : memref<128x640xf32, #tpu.memory_space<vmem>>, vector<56x640xf32>,
      %c0_24 = arith.constant 0 : index
      %c0_25 = arith.constant 0 : index
      %49 = vector.load %arg4[%c0_24, %c0_25] : memref<128x640xf32, #tpu.memory_space<vmem>>, vector<128x640xf32>
      %50 = arith.truncf %49 : vector<128x640xf32> to vector<128x640xbf16>
      %cst_26 = arith.constant dense<0.000000e+00> : vector<16x640xf32>
      %51 = tpu.matmul %1, %50, %cst_26 {dimension_numbers = #tpu.dot_dimension_numbers<[1], [0], [0], [1], [0, 0, 1, 1], [], []>} : vector<16x128xbf16>, vector<128x640xbf16>, vector<16x640xf32> -> vector<16x640xf32>
      %cst_27 = arith.constant 0.715203643 : f32
      %52 = vector.broadcast %cst_27 : f32 to vector<16x640xf32>
      %53 = arith.addf %51, %52 : vector<16x640xf32>
      %cst_28 = arith.constant -1.000000e-01 : f32
      %54 = vector.broadcast %cst_28 : f32 to vector<16x640xf32>
      %55 = arith.maximumf %53, %54 : vector<16x640xf32>
      %cst_29 = arith.constant -3.500000e+00 : f32
      %56 = vector.broadcast %cst_29 : f32 to vector<16x640xf32>
      %57 = arith.minimumf %55, %56 : vector<16x640xf32>
      %c0_30 = arith.constant 0 : index
      %c0_31 = arith.constant 0 : index
      %58 = vector.load %arg3[%c0_30, %c0_31] : memref<16x640xf32, #tpu.memory_space<vmem>>, vector<16x640xf32>
      tpu.vector_store %arg3[%c0_30, %c0_31], %57 {strides = array<i32>} : memref<16x640xf32, #tpu.memory_space<vmem>>, vector<16x640xf32>,
    } else {
    }
    return
  }
  func.func @transform_0(%arg0: i32) -> (i32, i32) {
    %c0_i32 = arith.constant 0 : i32
    %c0_i32_0 = arith.constant 0 : i32
    %c0_i32_1 = arith.constant 0 : i32
    return %c0_i32, %c0_i32_0 : i32, i32
  }
  func.func @transform_1(%arg0: i32) -> (i32, i32) {
    %c0_i32 = arith.constant 0 : i32
    %c0_i32_0 = arith.constant 0 : i32
    %c0_i32_1 = arith.constant 0 : i32
    return %c0_i32, %c0_i32_0 : i32, i32
  }
  func.func @transform_2(%arg0: i32) -> (i32, i32) {
    %c0_i32 = arith.constant 0 : i32
    %c0_i32_0 = arith.constant 0 : i32
    %c0_i32_1 = arith.constant 0 : i32
    return %c0_i32, %c0_i32_0 : i32, i32
  }
}

</mosaic_0001>

<llo_original>
// kernel: conv_transpose_add_clamp.1
$region0: #{conv_transpose_add_clamp.1}
  #allocation0 [shape = 'u32[]', space=smem, size = 0x4, offset = 0x4, fixed_abs, tag = 'smem constant byte address 0x4 - core index']
  #allocation1 [shape = 'u32[144,128]{1,0:T(1,128)}', space=vmem, size = 0x12000, scoped, tag = 'internal scratch']
  #allocation2 [shape = 'f32[128,640]{1,0:T(8,128)}', space=vmem, size = 0x50000, scoped, tag = 'scratch operand']
  %s0 = inlined_call_operand.vmem [shape: f32[8,640], index: 0, kind: input, shape index: {}]
  %s1 = inlined_call_operand.vmem [shape: bf16[16,128], index: 1, kind: input, shape index: {}]
  %s2 = inlined_call_operand.vmem [shape: f32[16,640], index: 2, kind: output, shape index: {}]
  %s3 = sld [smem:[#allocation0]]
  $region26: #{conv_transpose_add_clamp.1} parent=0
    _
  %s5 = ssub.s32 1, %s3
  %s6 = scalar_select 0, %s5, %s3
  // Predicated region
  $region2: #{conv_transpose_add_clamp.1} parent=0 // pred_check
    _
  $region3: #{conv_transpose_add_clamp.1} parent=0 // pred_check_branch
    %8 = sbr.rel (0) target = $region5
  $region4: #{conv_transpose_add_clamp.1} parent=0 // pred_region
    _
  $region5: #{conv_transpose_add_clamp.1} parent=0 // pred_fallthru
    _
  // Predicated region
  $region6: #{conv_transpose_add_clamp.1} parent=0 // pred_check
    _
  $region7: #{conv_transpose_add_clamp.1} parent=0 // pred_check_branch
    %10 = sbr.rel (0) target = $region9
  $region8: #{conv_transpose_add_clamp.1} parent=0 // pred_region
    _
  $region9: #{conv_transpose_add_clamp.1} parent=0 // pred_fallthru
    _
  %v12 = vld [vmem:[%s0] sm:$0xff]
  %v13 = vld [vmem:[%s0 + $0x8] sm:$0xff]
  %v14 = vld [vmem:[%s0 + $0x10] sm:$0xff]
  %v15 = vld [vmem:[%s0 + $0x18] sm:$0xff]
  %v16 = vld [vmem:[%s0 + $0x20] sm:$0xff]
  %v17 = vld [vmem:[%s1] sm:$0xf]
  %v18 = vld [vmem:[%s1 + $0x4] sm:$0xf]
  %v19 = vand.u32 2147483647, %v12
  %v20 = vand.u32 2147483647, %v13
  %v21 = vand.u32 2147483647, %v14
  %v22 = vand.u32 2147483647, %v15
  %v23 = vand.u32 2147483647, %v16
  %vm24 = vcmp.lt.f32.partialorder %v19, inf
  %vm25 = vcmp.lt.f32.partialorder %v20, inf
  %vm26 = vcmp.lt.f32.partialorder %v21, inf
  %vm27 = vcmp.lt.f32.partialorder %v22, inf
  %vm28 = vcmp.lt.f32.partialorder %v23, inf
  %v29 = vsel %vm24, 0.0, 1.0
  %v30 = vsel %vm25, 0.0, 1.0
  %v31 = vsel %vm26, 0.0, 1.0
  %v32 = vsel %vm27, 0.0, 1.0
  %v33 = vsel %vm28, 0.0, 1.0
  %v34 = vadd.f32 %v29, %v30
  %v35 = vadd.f32 %v34, %v31
  %v36 = vadd.f32 %v35, %v32
  %v37 = vadd.f32 %v36, %v33
  %38 = vadd.xlane.f32.xlu0 %v37
  %v39 = vpop.xlane.xlu0 %38
  %v40 = vrot.slane %v39, 4
  %v41 = vadd.f32 %v39, %v40
  %v42 = vrot.slane %v41, 2
  %v43 = vadd.f32 %v41, %v42
  %v44 = vrot.slane %v43, 1
  %v45 = vadd.f32 %v43, %v44
  %s46 = vtos %v45
  %v47 = vunpack.c.l.bf16 %v17
  %v48 = vunpack.c.l.bf16 %v18
  %v49 = vand.u32 2147483647, %v47
  %v50 = vand.u32 2147483647, %v48
  %vm51 = vcmp.lt.f32.partialorder %v49, inf
  %vm52 = vcmp.lt.f32.partialorder %v50, inf
  %v53 = vsel %vm51, 0.0, 1.0
  %v54 = vsel %vm52, 0.0, 1.0
  %v55 = vadd.f32 %v53, %v54
  %56 = vadd.xlane.f32.xlu0 %v55
  %v57 = vpop.xlane.xlu0 %56
  %v58 = vrot.slane %v57, 4
  %v59 = vadd.f32 %v57, %v58
  %v60 = vrot.slane %v59, 2
  %v61 = vadd.f32 %v59, %v60
  %v62 = vrot.slane %v61, 1
  %v63 = vadd.f32 %v61, %v62
  %s64 = vtos %v63
  %s65 = sadd.f32 %s46, %s64
  %p66 = scmp.eq.f32.partialorder %s65, 0.0
  // Predicated region
  $region10: #{conv_transpose_add_clamp.1} parent=0 // pred_check
    %p67 = pneg %p66
  $region11: #{conv_transpose_add_clamp.1} parent=0 // pred_check_branch
    %69 = sbr.rel (%p67) target = $region13
  $region12: #{conv_transpose_add_clamp.1} parent=0 // pred_region
    %70 = vst [vmem:[%s2] sm:$0xff] -3.5
    %71 = vst [vmem:[%s2 + $0x8] sm:$0xff] -3.5
    %72 = vst [vmem:[%s2 + $0x10] sm:$0xff] -3.5
    %73 = vst [vmem:[%s2 + $0x18] sm:$0xff] -3.5
    %74 = vst [vmem:[%s2 + $0x20] sm:$0xff] -3.5
    %75 = vst [vmem:[%s2 + $0x28] sm:$0xff] -3.5
    %76 = vst [vmem:[%s2 + $0x30] sm:$0xff] -3.5
    %77 = vst [vmem:[%s2 + $0x38] sm:$0xff] -3.5
    %78 = vst [vmem:[%s2 + $0x40] sm:$0xff] -3.5
    %79 = vst [vmem:[%s2 + $0x48] sm:$0xff] -3.5
  $region13: #{conv_transpose_add_clamp.1} parent=0 // pred_fallthru
    _
  %p80 = pneg %p66
  // Predicated region
  $region14: #{conv_transpose_add_clamp.1} parent=0 // pred_check
    _
  $region15: #{conv_transpose_add_clamp.1} parent=0 // pred_check_branch
    %82 = sbr.rel (%p66) target = $region17
  $region16: #{conv_transpose_add_clamp.1} parent=0 // pred_region
    %83 = vst [vmem:[#allocation2] sm:$0xff] %v12
    %84 = vst [vmem:[#allocation2 + $0x8] sm:$0xff] %v13
    %85 = vst [vmem:[#allocation2 + $0x10] sm:$0xff] %v14
    %86 = vst [vmem:[#allocation2 + $0x18] sm:$0xff] %v15
    %87 = vst [vmem:[#allocation2 + $0x20] sm:$0xff] %v16
    %88 = vrot.lane.b32.xlu0 %v12, 127
    %v89 = vpop.permute.xlu0 %88
    %90 = vrot.lane.b32.xlu0 %v13, 127
    %v91 = vpop.permute.xlu0 %90
    %92 = vrot.lane.b32.xlu0 %v14, 127
    %v93 = vpop.permute.xlu0 %92
    %94 = vrot.lane.b32.xlu0 %v15, 127
    %v95 = vpop.permute.xlu0 %94
    %96 = vrot.lane.b32.xlu0 %v16, 127
    %v97 = vpop.permute.xlu0 %96
    %v98 = vlaneseq
    %v99 = vand.u32 %v98, 127
    %vm100 = vcmp.lt.s32.totalorder %v99, 127
    %v101 = vsel %vm100, %v95, %v97
    %v102 = vsel %vm100, %v93, %v95
    %v103 = vsel %vm100, %v91, %v93
    %v104 = vsel %vm100, %v89, %v91
    %v105 = vsel %vm100, %v97, %v89
    %106 = vst [vmem:[#allocation2 + $0x28] sm:$0xff] %v104
    %107 = vst [vmem:[#allocation2 + $0x30] sm:$0xff] %v103
    %108 = vst [vmem:[#allocation2 + $0x38] sm:$0xff] %v102
    %109 = vst [vmem:[#allocation2 + $0x40] sm:$0xff] %v101
    %110 = vst [vmem:[#allocation2 + $0x48] sm:$0xff] %v105
    %111 = vrot.lane.b32.xlu0 %v12, 126
    %v112 = vpop.permute.xlu0 %111
    %113 = vrot.lane.b32.xlu0 %v13, 126
    %v114 = vpop.permute.xlu0 %113
    %115 = vrot.lane.b32.xlu0 %v14, 126
    %v116 = vpop.permute.xlu0 %115
    %117 = vrot.lane.b32.xlu0 %v15, 126
    %v118 = vpop.permute.xlu0 %117
    %119 = vrot.lane.b32.xlu0 %v16, 126
    %v120 = vpop.permute.xlu0 %119
    %vm121 = vcmp.lt.s32.totalorder %v99, 126
    %v122 = vsel %vm121, %v118, %v120
    %v123 = vsel %vm121, %v116, %v118
    %v124 = vsel %vm121, %v114, %v116
    %v125 = vsel %vm121, %v112, %v114
    %v126 = vsel %vm121, %v120, %v112
    %127 = vst [vmem:[#allocation2 + $0x50] sm:$0xff] %v125
    %128 = vst [vmem:[#allocation2 + $0x58] sm:$0xff] %v124
    %129 = vst [vmem:[#allocation2 + $0x60] sm:$0xff] %v123
    %130 = vst [vmem:[#allocation2 + $0x68] sm:$0xff] %v122
    %131 = vst [vmem:[#allocation2 + $0x70] sm:$0xff] %v126
    %132 = vrot.lane.b32.xlu0 %v12, 96
    %v133 = vpop.permute.xlu0 %132
    %134 = vrot.lane.b32.xlu0 %v13, 96
    %v135 = vpop.permute.xlu0 %134
    %136 = vrot.lane.b32.xlu0 %v14, 96
    %v137 = vpop.permute.xlu0 %136
    %138 = vrot.lane.b32.xlu0 %v15, 96
    %v139 = vpop.permute.xlu0 %138
    %140 = vrot.lane.b32.xlu0 %v16, 96
    %v141 = vpop.permute.xlu0 %140
    %vm142 = vcmp.lt.s32.totalorder %v99, 96
    %v143 = vsel %vm142, %v139, %v141
    %v144 = vsel %vm142, %v137, %v139
    %v145 = vsel %vm142, %v135, %v137
    %v146 = vsel %vm142, %v133, %v135
    %v147 = vsel %vm142, %v141, %v133
    %148 = vst [vmem:[#allocation2 + $0x78] sm:$0xff] %v146
    %149 = vst [vmem:[#allocation2 + $0x80] sm:$0xff] %v145
    %150 = vst [vmem:[#allocation2 + $0x88] sm:$0xff] %v144
    %151 = vst [vmem:[#allocation2 + $0x90] sm:$0xff] %v143
    %152 = vst [vmem:[#allocation2 + $0x98] sm:$0xff] %v147
    %153 = vrot.lane.b32.xlu0 %v12, 95
    %v154 = vpop.permute.xlu0 %153
    %155 = vrot.lane.b32.xlu0 %v13, 95
    %v156 = vpop.permute.xlu0 %155
    %157 = vrot.lane.b32.xlu0 %v14, 95
    %v158 = vpop.permute.xlu0 %157
    %159 = vrot.lane.b32.xlu0 %v15, 95
    %v160 = vpop.permute.xlu0 %159
    %161 = vrot.lane.b32.xlu0 %v16, 95
    %v162 = vpop.permute.xlu0 %161
    %vm163 = vcmp.lt.s32.totalorder %v99, 95
    %v164 = vsel %vm163, %v160, %v162
    %v165 = vsel %vm163, %v158, %v160
    %v166 = vsel %vm163, %v156, %v158
    %v167 = vsel %vm163, %v154, %v156
    %v168 = vsel %vm163, %v162, %v154
    %169 = vst [vmem:[#allocation2 + $0xa0] sm:$0xff] %v167
    %170 = vst [vmem:[#allocation2 + $0xa8] sm:$0xff] %v166
    %171 = vst [vmem:[#allocation2 + $0xb0] sm:$0xff] %v165
    %172 = vst [vmem:[#allocation2 + $0xb8] sm:$0xff] %v164
    %173 = vst [vmem:[#allocation2 + $0xc0] sm:$0xff] %v168
    %174 = vrot.lane.b32.xlu0 %v12, 94
    %v175 = vpop.permute.xlu0 %174
    %176 = vrot.lane.b32.xlu0 %v13, 94
    %v177 = vpop.permute.xlu0 %176
    %178 = vrot.lane.b32.xlu0 %v14, 94
    %v179 = vpop.permute.xlu0 %178
    %180 = vrot.lane.b32.xlu0 %v15, 94
    %v181 = vpop.permute.xlu0 %180
    %182 = vrot.lane.b32.xlu0 %v16, 94
    %v183 = vpop.permute.xlu0 %182
    %vm184 = vcmp.lt.s32.totalorder %v99, 94
    %v185 = vsel %vm184, %v181, %v183
    %v186 = vsel %vm184, %v179, %v181
    %v187 = vsel %vm184, %v177, %v179
    %v188 = vsel %vm184, %v175, %v177
    %v189 = vsel %vm184, %v183, %v175
    %190 = vst [vmem:[#allocation2 + $0xc8] sm:$0xff] %v188
    %191 = vst [vmem:[#allocation2 + $0xd0] sm:$0xff] %v187
    %192 = vst [vmem:[#allocation2 + $0xd8] sm:$0xff] %v186
    %193 = vst [vmem:[#allocation2 + $0xe0] sm:$0xff] %v185
    %194 = vst [vmem:[#allocation2 + $0xe8] sm:$0xff] %v189
    %195 = vrot.lane.b32.xlu0 %v12, 64
    %v196 = vpop.permute.xlu0 %195
    %197 = vrot.lane.b32.xlu0 %v13, 64
    %v198 = vpop.permute.xlu0 %197
    %199 = vrot.lane.b32.xlu0 %v14, 64
    %v200 = vpop.permute.xlu0 %199
    %201 = vrot.lane.b32.xlu0 %v15, 64
    %v202 = vpop.permute.xlu0 %201
    %203 = vrot.lane.b32.xlu0 %v16, 64
    %v204 = vpop.permute.xlu0 %203
    %vm205 = vcmp.lt.s32.totalorder %v99, 64
    %v206 = vsel %vm205, %v202, %v204
    %v207 = vsel %vm205, %v200, %v202
    %v208 = vsel %vm205, %v198, %v200
    %v209 = vsel %vm205, %v196, %v198
    %v210 = vsel %vm205, %v204, %v196
    %211 = vst [vmem:[#allocation2 + $0xf0] sm:$0xff] %v209
    %212 = vst [vmem:[#allocation2 + $0xf8] sm:$0xff] %v208
    %213 = vst [vmem:[#allocation2 + $0x100] sm:$0xff] %v207
    %214 = vst [vmem:[#allocation2 + $0x108] sm:$0xff] %v206
    %215 = vst [vmem:[#allocation2 + $0x110] sm:$0xff] %v210
    %216 = vrot.lane.b32.xlu0 %v12, 63
    %v217 = vpop.permute.xlu0 %216
    %218 = vrot.lane.b32.xlu0 %v13, 63
    %v219 = vpop.permute.xlu0 %218
    %220 = vrot.lane.b32.xlu0 %v14, 63
    %v221 = vpop.permute.xlu0 %220
    %222 = vrot.lane.b32.xlu0 %v15, 63
    %v223 = vpop.permute.xlu0 %222
    %224 = vrot.lane.b32.xlu0 %v16, 63
    %v225 = vpop.permute.xlu0 %224
    %vm226 = vcmp.lt.s32.totalorder %v99, 63
    %v227 = vsel %vm226, %v223, %v225
    %v228 = vsel %vm226, %v221, %v223
    %v229 = vsel %vm226, %v219, %v221
    %v230 = vsel %vm226, %v217, %v219
    %v231 = vsel %vm226, %v225, %v217
    %232 = vst [vmem:[#allocation2 + $0x118] sm:$0xff] %v230
    %233 = vst [vmem:[#allocation2 + $0x120] sm:$0xff] %v229
    %234 = vst [vmem:[#allocation2 + $0x128] sm:$0xff] %v228
    %235 = vst [vmem:[#allocation2 + $0x130] sm:$0xff] %v227
    %236 = vst [vmem:[#allocation2 + $0x138] sm:$0xff] %v231
    %237 = vrot.lane.b32.xlu0 %v12, 62
    %v238 = vpop.permute.xlu0 %237
    %239 = vrot.lane.b32.xlu0 %v13, 62
    %v240 = vpop.permute.xlu0 %239
    %241 = vrot.lane.b32.xlu0 %v14, 62
    %v242 = vpop.permute.xlu0 %241
    %243 = vrot.lane.b32.xlu0 %v15, 62
    %v244 = vpop.permute.xlu0 %243
    %245 = vrot.lane.b32.xlu0 %v16, 62
    %v246 = vpop.permute.xlu0 %245
    %vm247 = vcmp.lt.s32.totalorder %v99, 62
    %v248 = vsel %vm247, %v244, %v246
    %v249 = vsel %vm247, %v242, %v244
    %v250 = vsel %vm247, %v240, %v242
    %v251 = vsel %vm247, %v238, %v240
    %v252 = vsel %vm247, %v246, %v238
    %253 = vst [vmem:[#allocation2 + $0x140] sm:$0xff] %v251
    %254 = vst [vmem:[#allocation2 + $0x148] sm:$0xff] %v250
    %255 = vst [vmem:[#allocation2 + $0x150] sm:$0xff] %v249
    %256 = vst [vmem:[#allocation2 + $0x158] sm:$0xff] %v248
    %257 = vst [vmem:[#allocation2 + $0x160] sm:$0xff] %v252
    %258 = vst [vmem:[#allocation2 + $0x168] sm:$0xff] 0.0
    %259 = vst [vmem:[#allocation2 + $0x170] sm:$0xff] 0.0
    %260 = vst [vmem:[#allocation2 + $0x178] sm:$0xff] 0.0
    %261 = vst [vmem:[#allocation2 + $0x180] sm:$0xff] 0.0
    %262 = vst [vmem:[#allocation2 + $0x188] sm:$0xff] 0.0
    %263 = vst [vmem:[#allocation2 + $0x190] sm:$0xff] 0.0
    %264 = vst [vmem:[#allocation2 + $0x198] sm:$0xff] 0.0
    %265 = vst [vmem:[#allocation2 + $0x1a0] sm:$0xff] 0.0
    %266 = vst [vmem:[#allocation2 + $0x1a8] sm:$0xff] 0.0
    %267 = vst [vmem:[#allocation2 + $0x1b0] sm:$0xff] 0.0
    %268 = vst [vmem:[#allocation2 + $0x1b8] sm:$0xff] 0.0
    %269 = vst [vmem:[#allocation2 + $0x1c0] sm:$0xff] 0.0
    %270 = vst [vmem:[#allocation2 + $0x1c8] sm:$0xff] 0.0
    %271 = vst [vmem:[#allocation2 + $0x1d0] sm:$0xff] 0.0
    %272 = vst [vmem:[#allocation2 + $0x1d8] sm:$0xff] 0.0
    %273 = vst [vmem:[#allocation2 + $0x1e0] sm:$0xff] 0.0
    %274 = vst [vmem:[#allocation2 + $0x1e8] sm:$0xff] 0.0
    %275 = vst [vmem:[#allocation2 + $0x1f0] sm:$0xff] 0.0
    %276 = vst [vmem:[#allocation2 + $0x1f8] sm:$0xff] 0.0
    %277 = vst [vmem:[#allocation2 + $0x200] sm:$0xff] 0.0
    %278 = vst [vmem:[#allocation2 + $0x208] sm:$0xff] 0.0
    %279 = vst [vmem:[#allocation2 + $0x210] sm:$0xff] 0.0
    %280 = vst [vmem:[#allocation2 + $0x218] sm:$0xff] 0.0
    %281 = vst [vmem:[#allocation2 + $0x220] sm:$0xff] 0.0
    %282 = vst [vmem:[#allocation2 + $0x228] sm:$0xff] 0.0
    %283 = vst [vmem:[#allocation2 + $0x230] sm:$0xff] 0.0
    %284 = vst [vmem:[#allocation2 + $0x238] sm:$0xff] 0.0
    %285 = vst [vmem:[#allocation2 + $0x240] sm:$0xff] 0.0
    %286 = vst [vmem:[#allocation2 + $0x248] sm:$0xff] 0.0
    %287 = vst [vmem:[#allocation2 + $0x250] sm:$0xff] 0.0
    %288 = vst [vmem:[#allocation2 + $0x258] sm:$0xff] 0.0
    %289 = vst [vmem:[#allocation2 + $0x260] sm:$0xff] 0.0
    %290 = vst [vmem:[#allocation2 + $0x268] sm:$0xff] 0.0
    %291 = vst [vmem:[#allocation2 + $0x270] sm:$0xff] 0.0
    %292 = vst [vmem:[#allocation2 + $0x278] sm:$0xff] 0.0
    %v293 = vld [vmem:[#allocation2] sm:$0xff]
    %v294 = vld [vmem:[#allocation2 + $0x8] sm:$0xff]
    %v295 = vld [vmem:[#allocation2 + $0x10] sm:$0xff]
    %v296 = vld [vmem:[#allocation2 + $0x18] sm:$0xff]
    %v297 = vld [vmem:[#allocation2 + $0x20] sm:$0xff]
    %v298 = vld [vmem:[#allocation2 + $0x28] sm:$0xff]
    %v299 = vld [vmem:[#allocation2 + $0x30] sm:$0xff]
    %v300 = vld [vmem:[#allocation2 + $0x38] sm:$0xff]
    %v301 = vld [vmem:[#allocation2 + $0x40] sm:$0xff]
    %v302 = vld [vmem:[#allocation2 + $0x48] sm:$0xff]
    %v303 = vld [vmem:[#allocation2 + $0x50] sm:$0xff]
    %v304 = vld [vmem:[#allocation2 + $0x58] sm:$0xff]
    %v305 = vld [vmem:[#allocation2 + $0x60] sm:$0xff]
    %v306 = vld [vmem:[#allocation2 + $0x68] sm:$0xff]
    %v307 = vld [vmem:[#allocation2 + $0x70] sm:$0xff]
    %v308 = vld [vmem:[#allocation2 + $0x78] sm:$0xff]
    %v309 = vld [vmem:[#allocation2 + $0x80] sm:$0xff]
    %v310 = vld [vmem:[#allocation2 + $0x88] sm:$0xff]
    %v311 = vld [vmem:[#allocation2 + $0x90] sm:$0xff]
    %v312 = vld [vmem:[#allocation2 + $0x98] sm:$0xff]
    %v313 = vld [vmem:[#allocation2 + $0xa0] sm:$0xff]
    %v314 = vld [vmem:[#allocation2 + $0xa8] sm:$0xff]
    %v315 = vld [vmem:[#allocation2 + $0xb0] sm:$0xff]
    %v316 = vld [vmem:[#allocation2 + $0xb8] sm:$0xff]
    %v317 = vld [vmem:[#allocation2 + $0xc0] sm:$0xff]
    %v318 = vld [vmem:[#allocation2 + $0xc8] sm:$0xff]
    %v319 = vld [vmem:[#allocation2 + $0xd0] sm:$0xff]
    %v320 = vld [vmem:[#allocation2 + $0xd8] sm:$0xff]
    %v321 = vld [vmem:[#allocation2 + $0xe0] sm:$0xff]
    %v322 = vld [vmem:[#allocation2 + $0xe8] sm:$0xff]
    %v323 = vld [vmem:[#allocation2 + $0xf0] sm:$0xff]
    %v324 = vld [vmem:[#allocation2 + $0xf8] sm:$0xff]
    %v325 = vld [vmem:[#allocation2 + $0x100] sm:$0xff]
    %v326 = vld [vmem:[#allocation2 + $0x108] sm:$0xff]
    %v327 = vld [vmem:[#allocation2 + $0x110] sm:$0xff]
    %v328 = vld [vmem:[#allocation2 + $0x118] sm:$0xff]
    %v329 = vld [vmem:[#allocation2 + $0x120] sm:$0xff]
    %v330 = vld [vmem:[#allocation2 + $0x128] sm:$0xff]
    %v331 = vld [vmem:[#allocation2 + $0x130] sm:$0xff]
    %v332 = vld [vmem:[#allocation2 + $0x138] sm:$0xff]
    %v333 = vld [vmem:[#allocation2 + $0x140] sm:$0xff]
    %v334 = vld [vmem:[#allocation2 + $0x148] sm:$0xff]
    %v335 = vld [vmem:[#allocation2 + $0x150] sm:$0xff]
    %v336 = vld [vmem:[#allocation2 + $0x158] sm:$0xff]
    %v337 = vld [vmem:[#allocation2 + $0x160] sm:$0xff]
    %v338 = vld [vmem:[#allocation2 + $0x168] sm:$0xff]
    %v339 = vld [vmem:[#allocation2 + $0x170] sm:$0xff]
    %v340 = vld [vmem:[#allocation2 + $0x178] sm:$0xff]
    %v341 = vld [vmem:[#allocation2 + $0x180] sm:$0xff]
    %v342 = vld [vmem:[#allocation2 + $0x188] sm:$0xff]
    %v343 = vld [vmem:[#allocation2 + $0x190] sm:$0xff]
    %v344 = vld [vmem:[#allocation2 + $0x198] sm:$0xff]
    %v345 = vld [vmem:[#allocation2 + $0x1a0] sm:$0xff]
    %v346 = vld [vmem:[#allocation2 + $0x1a8] sm:$0xff]
    %v347 = vld [vmem:[#allocation2 + $0x1b0] sm:$0xff]
    %v348 = vld [vmem:[#allocation2 + $0x1b8] sm:$0xff]
    %v349 = vld [vmem:[#allocation2 + $0x1c0] sm:$0xff]
    %v350 = vld [vmem:[#allocation2 + $0x1c8] sm:$0xff]
    %v351 = vld [vmem:[#allocation2 + $0x1d0] sm:$0xff]
    %v352 = vld [vmem:[#allocation2 + $0x1d8] sm:$0xff]
    %v353 = vld [vmem:[#allocation2 + $0x1e0] sm:$0xff]
    %v354 = vld [vmem:[#allocation2 + $0x1e8] sm:$0xff]
    %v355 = vld [vmem:[#allocation2 + $0x1f0] sm:$0xff]
    %v356 = vld [vmem:[#allocation2 + $0x1f8] sm:$0xff]
    %v357 = vld [vmem:[#allocation2 + $0x200] sm:$0xff]
    %v358 = vld [vmem:[#allocation2 + $0x208] sm:$0xff]
    %v359 = vld [vmem:[#allocation2 + $0x210] sm:$0xff]
    %v360 = vld [vmem:[#allocation2 + $0x218] sm:$0xff]
    %v361 = vld [vmem:[#allocation2 + $0x220] sm:$0xff]
    %v362 = vld [vmem:[#allocation2 + $0x228] sm:$0xff]
    %v363 = vld [vmem:[#allocation2 + $0x230] sm:$0xff]
    %v364 = vld [vmem:[#allocation2 + $0x238] sm:$0xff]
    %v365 = vld [vmem:[#allocation2 + $0x240] sm:$0xff]
    %v366 = vld [vmem:[#allocation2 + $0x248] sm:$0xff]
    %v367 = vld [vmem:[#allocation2 + $0x250] sm:$0xff]
    %v368 = vld [vmem:[#allocation2 + $0x258] sm:$0xff]
    %v369 = vld [vmem:[#allocation2 + $0x260] sm:$0xff]
    %v370 = vld [vmem:[#allocation2 + $0x268] sm:$0xff]
    %v371 = vld [vmem:[#allocation2 + $0x270] sm:$0xff]
    %v372 = vld [vmem:[#allocation2 + $0x278] sm:$0xff]
    %v373 = vpack.c.bf16 %v298, %v293
    %v374 = vpack.c.bf16 %v299, %v294
    %v375 = vpack.c.bf16 %v300, %v295
    %v376 = vpack.c.bf16 %v301, %v296
    %v377 = vpack.c.bf16 %v302, %v297
    %v378 = vpack.c.bf16 %v308, %v303
    %v379 = vpack.c.bf16 %v309, %v304
    %v380 = vpack.c.bf16 %v310, %v305
    %v381 = vpack.c.bf16 %v311, %v306
    %v382 = vpack.c.bf16 %v312, %v307
    %v383 = vpack.c.bf16 %v318, %v313
    %v384 = vpack.c.bf16 %v319, %v314
    %v385 = vpack.c.bf16 %v320, %v315
    %v386 = vpack.c.bf16 %v321, %v316
    %v387 = vpack.c.bf16 %v322, %v317
    %v388 = vpack.c.bf16 %v328, %v323
    %v389 = vpack.c.bf16 %v329, %v324
    %v390 = vpack.c.bf16 %v330, %v325
    %v391 = vpack.c.bf16 %v331, %v326
    %v392 = vpack.c.bf16 %v332, %v327
    %v393 = vpack.c.bf16 %v338, %v333
    %v394 = vpack.c.bf16 %v339, %v334
    %v395 = vpack.c.bf16 %v340, %v335
    %v396 = vpack.c.bf16 %v341, %v336
    %v397 = vpack.c.bf16 %v342, %v337
    %v398 = vpack.c.bf16 %v348, %v343
    %v399 = vpack.c.bf16 %v349, %v344
    %v400 = vpack.c.bf16 %v350, %v345
    %v401 = vpack.c.bf16 %v351, %v346
    %v402 = vpack.c.bf16 %v352, %v347
    %v403 = vpack.c.bf16 %v358, %v353
    %v404 = vpack.c.bf16 %v359, %v354
    %v405 = vpack.c.bf16 %v360, %v355
    %v406 = vpack.c.bf16 %v361, %v356
    %v407 = vpack.c.bf16 %v362, %v357
    %v408 = vpack.c.bf16 %v368, %v363
    %v409 = vpack.c.bf16 %v369, %v364
    %v410 = vpack.c.bf16 %v370, %v365
    %v411 = vpack.c.bf16 %v371, %v366
    %v412 = vpack.c.bf16 %v372, %v367
    %v415 = vunpack.c.l.b16 %v17
    %v416 = vunpack.c.l.b16 %v18
    %v417 = vpack.c.b16 %v416, %v415
    %419 = vmatprep.subr.bf16.mxu0 %v374
    %420 = vmatpush1.bf16.msra.mxu0 %v373
    %421 = vmatprep.subr.bf16.mxu0 %v379
    %422 = vmatpush1.bf16.msra.mxu0 %v378
    %423 = vmatprep.subr.bf16.mxu0 %v384
    %424 = vmatpush1.bf16.msra.mxu0 %v383
    %425 = vmatprep.subr.bf16.mxu0 %v389
    %426 = vmatpush1.bf16.msra.mxu0 %v388
    %427 = vmatprep.subr.bf16.mxu0 %v394
    %428 = vmatpush1.bf16.msra.mxu0 %v393
    %429 = vmatprep.subr.bf16.mxu0 %v399
    %430 = vmatpush1.bf16.msra.mxu0 %v398
    %431 = vmatprep.subr.bf16.mxu0 %v404
    %432 = vmatpush1.bf16.msra.mxu0 %v403
    %433 = vmatprep.subr.bf16.mxu0 %v409
    %434 = vmatpush1.bf16.msra.mxu0 %v408
    %435 = vmatprep.subr.bf16.mxu0 0
    %436 = vmatpush1.bf16.msra.mxu0 0
    %437 = vmatprep.subr.bf16.mxu0 0
    %438 = vmatpush1.bf16.msra.mxu0 0
    %439 = vmatprep.subr.bf16.mxu0 0
    %440 = vmatpush1.bf16.msra.mxu0 0
    %441 = vmatprep.subr.bf16.mxu0 0
    %442 = vmatpush1.bf16.msra.mxu0 0
    %443 = vmatprep.subr.bf16.mxu0 0
    %444 = vmatpush1.bf16.msra.mxu0 0
    %445 = vmatprep.subr.bf16.mxu0 0
    %446 = vmatpush1.bf16.msra.mxu0 0
    %447 = vmatprep.subr.bf16.mxu0 0
    %448 = vmatpush1.bf16.msra.mxu0 0
    %449 = vmatprep.subr.bf16.mxu0 0
    %450 = vmatpush1.bf16.msra.mxu0 0
    %451 = vmatprep.mubr.bf16.mxu0 0
    %452 = vmatmul.mubr.bf16.gmra.mrb[0].mxu0 %v417
    %v453 = vpop.f32.mrb[0].mxu0
    %v454 = vadd.f32 0.71520364, %v453
    %v455 = vpop.f32.mrb[0].mxu0
    %v456 = vadd.f32 0.71520364, %v455
    %v457 = vpop.f32.mrb[0].mxu0
    %v458 = vadd.f32 0.71520364, %v457
    %v459 = vpop.f32.mrb[0].mxu0
    %v460 = vadd.f32 0.71520364, %v459
    %461 = vdwg.mxu0
    %462 = vmatprep.subr.bf16.mxu0 %v376
    %463 = vmatpush1.bf16.msra.mxu0 %v375
    %464 = vmatprep.subr.bf16.mxu0 %v381
    %465 = vmatpush1.bf16.msra.mxu0 %v380
    %466 = vmatprep.subr.bf16.mxu0 %v386
    %467 = vmatpush1.bf16.msra.mxu0 %v385
    %468 = vmatprep.subr.bf16.mxu0 %v391
    %469 = vmatpush1.bf16.msra.mxu0 %v390
    %470 = vmatprep.subr.bf16.mxu0 %v396
    %471 = vmatpush1.bf16.msra.mxu0 %v395
    %472 = vmatprep.subr.bf16.mxu0 %v401
    %473 = vmatpush1.bf16.msra.mxu0 %v400
    %474 = vmatprep.subr.bf16.mxu0 %v406
    %475 = vmatpush1.bf16.msra.mxu0 %v405
    %476 = vmatprep.subr.bf16.mxu0 %v411
    %477 = vmatpush1.bf16.msra.mxu0 %v410
    %478 = vmatprep.subr.bf16.mxu0 0
    %479 = vmatpush1.bf16.msra.mxu0 0
    %480 = vmatprep.subr.bf16.mxu0 0
    %481 = vmatpush1.bf16.msra.mxu0 0
    %482 = vmatprep.subr.bf16.mxu0 0
    %483 = vmatpush1.bf16.msra.mxu0 0
    %484 = vmatprep.subr.bf16.mxu0 0
    %485 = vmatpush1.bf16.msra.mxu0 0
    %486 = vmatprep.subr.bf16.mxu0 0
    %487 = vmatpush1.bf16.msra.mxu0 0
    %488 = vmatprep.subr.bf16.mxu0 0
    %489 = vmatpush1.bf16.msra.mxu0 0
    %490 = vmatprep.subr.bf16.mxu0 0
    %491 = vmatpush1.bf16.msra.mxu0 0
    %492 = vmatprep.subr.bf16.mxu0 0
    %493 = vmatpush1.bf16.msra.mxu0 0
    %494 = vmatprep.mubr.bf16.mxu0 0
    %495 = vmatmul.mubr.bf16.gmra.mrb[0].mxu0 %v417
    %v496 = vpop.f32.mrb[0].mxu0
    %v497 = vadd.f32 0.71520364, %v496
    %v498 = vpop.f32.mrb[0].mxu0
    %v499 = vadd.f32 0.71520364, %v498
    %v500 = vpop.f32.mrb[0].mxu0
    %v501 = vadd.f32 0.71520364, %v500
    %v502 = vpop.f32.mrb[0].mxu0
    %v503 = vadd.f32 0.71520364, %v502
    %504 = vdwg.mxu0
    %505 = vmatprep.subr.bf16.mxu0 0
    %506 = vmatpush1.bf16.msra.mxu0 %v377
    %507 = vmatprep.subr.bf16.mxu0 0
    %508 = vmatpush1.bf16.msra.mxu0 %v382
    %509 = vmatprep.subr.bf16.mxu0 0
    %510 = vmatpush1.bf16.msra.mxu0 %v387
    %511 = vmatprep.subr.bf16.mxu0 0
    %512 = vmatpush1.bf16.msra.mxu0 %v392
    %513 = vmatprep.subr.bf16.mxu0 0
    %514 = vmatpush1.bf16.msra.mxu0 %v397
    %515 = vmatprep.subr.bf16.mxu0 0
    %516 = vmatpush1.bf16.msra.mxu0 %v402
    %517 = vmatprep.subr.bf16.mxu0 0
    %518 = vmatpush1.bf16.msra.mxu0 %v407
    %519 = vmatprep.subr.bf16.mxu0 0
    %520 = vmatpush1.bf16.msra.mxu0 %v412
    %521 = vmatprep.subr.bf16.mxu0 0
    %522 = vmatpush1.bf16.msra.mxu0 0
    %523 = vmatprep.subr.bf16.mxu0 0
    %524 = vmatpush1.bf16.msra.mxu0 0
    %525 = vmatprep.subr.bf16.mxu0 0
    %526 = vmatpush1.bf16.msra.mxu0 0
    %527 = vmatprep.subr.bf16.mxu0 0
    %528 = vmatpush1.bf16.msra.mxu0 0
    %529 = vmatprep.subr.bf16.mxu0 0
    %530 = vmatpush1.bf16.msra.mxu0 0
    %531 = vmatprep.subr.bf16.mxu0 0
    %532 = vmatpush1.bf16.msra.mxu0 0
    %533 = vmatprep.subr.bf16.mxu0 0
    %534 = vmatpush1.bf16.msra.mxu0 0
    %535 = vmatprep.subr.bf16.mxu0 0
    %536 = vmatpush1.bf16.msra.mxu0 0
    %537 = vmatprep.mubr.bf16.mxu0 0
    %538 = vmatmul.mubr.bf16.gmra.mrb[0].mxu0 %v417
    %v539 = vpop.f32.mrb[0].mxu0
    %v540 = vadd.f32 0.71520364, %v539
    %v541 = vpop.f32.mrb[0].mxu0
    %v542 = vpop.f32.mrb[0].mxu0
    %v543 = vadd.f32 0.71520364, %v542
    %v544 = vpop.f32.mrb[0].mxu0
    %545 = vdwg.mxu0
    %v546 = vmax.f32 %v454, -0.1
    %v547 = vmax.f32 %v456, -0.1
    %v548 = vmax.f32 %v497, -0.1
    %v549 = vmax.f32 %v499, -0.1
    %v550 = vmax.f32 %v540, -0.1
    %v551 = vmax.f32 %v458, -0.1
    %v552 = vmax.f32 %v460, -0.1
    %v553 = vmax.f32 %v501, -0.1
    %v554 = vmax.f32 %v503, -0.1
    %v555 = vmax.f32 %v543, -0.1
    %v556 = vmin.f32 %v546, -3.5
    %v557 = vmin.f32 %v547, -3.5
    %v558 = vmin.f32 %v548, -3.5
    %v559 = vmin.f32 %v549, -3.5
    %v560 = vmin.f32 %v550, -3.5
    %v561 = vmin.f32 %v551, -3.5
    %v562 = vmin.f32 %v552, -3.5
    %v563 = vmin.f32 %v553, -3.5
    %v564 = vmin.f32 %v554, -3.5
    %v565 = vmin.f32 %v555, -3.5
    %566 = vst [vmem:[%s2] sm:$0xff] %v556
    %567 = vst [vmem:[%s2 + $0x8] sm:$0xff] %v557
    %568 = vst [vmem:[%s2 + $0x10] sm:$0xff] %v558
    %569 = vst [vmem:[%s2 + $0x18] sm:$0xff] %v559
    %570 = vst [vmem:[%s2 + $0x20] sm:$0xff] %v560
    %571 = vst [vmem:[%s2 + $0x28] sm:$0xff] %v561
    %572 = vst [vmem:[%s2 + $0x30] sm:$0xff] %v562
    %573 = vst [vmem:[%s2 + $0x38] sm:$0xff] %v563
    %574 = vst [vmem:[%s2 + $0x40] sm:$0xff] %v564
    %575 = vst [vmem:[%s2 + $0x48] sm:$0xff] %v565
  $region17: #{conv_transpose_add_clamp.1} parent=0 // pred_fallthru
    _
  // Predicated region
  $region18: #{conv_transpose_add_clamp.1} parent=0 // pred_check
    _
  $region19: #{conv_transpose_add_clamp.1} parent=0 // pred_check_branch
    %577 = sbr.rel (0) target = $region21
  $region20: #{conv_transpose_add_clamp.1} parent=0 // pred_region
    _
  $region21: #{conv_transpose_add_clamp.1} parent=0 // pred_fallthru
    _
  // Predicated region
  $region22: #{conv_transpose_add_clamp.1} parent=0 // pred_check
    _
  $region23: #{conv_transpose_add_clamp.1} parent=0 // pred_check_branch
    %579 = sbr.rel (0) target = $region25
  $region24: #{conv_transpose_add_clamp.1} parent=0 // pred_region
    _
  $region25: #{conv_transpose_add_clamp.1} parent=0 // pred_fallthru
    _

</llo_original>
